<compile_context>
chip_gen: v5e
topology: v5e:2x2
jax: 0.10.0
libtpu: 0.0.40
codegen_flags: <defaults>
</compile_context>

<pallas_src>
import functools
import math

import numpy as np
import jax
import jax.numpy as jnp
from jax.experimental import pallas as pl
from jax.experimental.pallas import tpu as pltpu


def _round_up(a, b):
    return (a + b - 1) // b * b


def _lcm(a, b):
    return a * b // math.gcd(a, b)


def _pool_matrix_np(n_out, n_in):
    """A[i, j] = 1 iff input index j lies in the 3-tap stride-2 window centred at 2*i."""
    i = np.arange(n_out)[:, None]
    j = np.arange(n_in)[None, :]
    return (np.abs(j - 2 * i) <= 1).astype(np.float32)


def _composed_pool_matrices(h, w, sampling_times):
    """Host-composed pyramid matrices: AH_total (Hout,H), AWt_total (W,Wout), scale."""
    ah_total = np.eye(h, dtype=np.float32)
    awt_total = np.eye(w, dtype=np.float32)
    h_cur, w_cur = h, w
    for _ in range(sampling_times):
        h_nxt, w_nxt = (h_cur + 1) // 2, (w_cur + 1) // 2
        ah_total = _pool_matrix_np(h_nxt, h_cur) @ ah_total
        awt_total = awt_total @ _pool_matrix_np(w_nxt, w_cur).T
        h_cur, w_cur = h_nxt, w_nxt
    scale = (1.0 / 9.0) ** sampling_times   # PyTorch divides by 9 every stage
    return ah_total, awt_total, scale, h_cur, w_cur


def _vmem_limit_bytes():
    """~3/4 of physical VMEM: ~96 MiB on v5e/v6e (128 MiB), ~48 MiB on v7x (64 MiB)."""
    cap = 64 * 1024 * 1024
    try:
        cap = int(getattr(pltpu.get_tpu_info(), "vmem_capacity_bytes", cap)) or cap
    except Exception:
        pass
    return (3 * cap) // 4


def _choose_block_m(m, h, w, wout, vmem_limit):
    """Images per grid step.

    Non-full-extent blocks must keep their last dim a multiple of 128, so mt is a
    multiple of q = lcm(128/gcd(W,128), 128/gcd(Wout,128)) (which also makes the
    output block >=128 lanes wide).  For small batches we fall back to a single
    full-extent block (no alignment requirement).
    """
    q = _lcm(128 // math.gcd(w, 128), 128 // math.gcd(wout, 128))
    if m < 2 * q:
        return m                                            # one full-extent block
    # Resident block-diagonal AWt matrix (mt*W x mt*Wout f32) capped at 4 MiB.
    cap_bd = math.isqrt((4 * 1024 * 1024) // (4 * w * wout)) if w * wout else m
    # Double-buffered input block within ~1/3 of the VMEM budget (lane-padded).
    cap_in = (vmem_limit // 6) // (4 * _round_up(h, 8) * w)
    # >= 4 grid steps when possible, else >= 2 (v7x megacore + DMA/compute overlap).
    steps_cap = m // 4 if m >= 4 * q else m // 2
    mt = max(q, (min(steps_cap, cap_bd, cap_in) // q) * q)
    return mt


def _pyramid_kernel(ah_ref, bd_ref, x_ref, o_ref, *, scale):
    """out = (AH_total @ X_blk) @ blockdiag(AWt_total) * (1/9)^s for one column block.

    ah_ref: (Hout, H)            resident
    bd_ref: (Mt*W, Mt*Wout)      resident block-diagonal AWt_total
    x_ref : (H, Mt*W)            Mt images packed on the lane axis
    o_ref : (Hout, Mt*Wout)      lane-dense output block
    """
    # NOTE: HIGHEST keeps an exact f32 match vs. the PyTorch reference; at these
    # shapes MXU passes are nowhere near the bottleneck.  For large-image /
    # bf16 pipelines drop to Precision.HIGH (or bf16 operands) to cut MXU passes.
    t = jax.lax.dot_general(                     # pool along H: (Hout, Mt*W)
        ah_ref[...], x_ref[...],
        dimension_numbers=(((1,), (0,)), ((), ())),
        preferred_element_type=jnp.float32,
        precision=jax.lax.Precision.HIGHEST,
    )
    out = jax.lax.dot_general(                   # pool along W: (Hout, Mt*Wout)
        t, bd_ref[...],
        dimension_numbers=(((1,), (0,)), ((), ())),
        preferred_element_type=jnp.float32,
        precision=jax.lax.Precision.HIGHEST,
    )
    o_ref[...] = (out * jnp.float32(scale)).astype(o_ref.dtype)


def _input_projection_a_impl(x, sampling_times):
    """Matches InputProjectionA.forward: `sampling_times` x AvgPool2d(3, 2, 1)."""
    if sampling_times <= 0:
        return x
    b, c, h, w = x.shape
    m = b * c
    ah, awt, scale, hout, wout = _composed_pool_matrices(h, w, sampling_times)

    vmem_limit = _vmem_limit_bytes()
    mt = _choose_block_m(m, h, w, wout, vmem_limit)
    m_pad = _round_up(m, mt)
    # TODO(synk): for gigantic single images where even one (H, W) column block
    # exceeds VMEM, add a W-axis reduction grid dimension with a VMEM accumulator
    # (pl.when init/finalize, axis marked "arbitrary") instead of halo tiling.

    # (B, C, H, W) -> (H, M, W) -> (H, M_pad*W): batch/channel packed on lanes.
    xt = jnp.transpose(x.reshape(m, h, w), (1, 0, 2))
    if m_pad != m:
        xt = jnp.pad(xt, ((0, 0), (0, m_pad - m), (0, 0)))   # zero pad => safe with blockdiag
    xt = xt.reshape(h, m_pad * w)

    bd = np.kron(np.eye(mt, dtype=np.float32), awt)          # (mt*W, mt*Wout)
    grid = (m_pad // mt,)

    out = pl.pallas_call(
        functools.partial(_pyramid_kernel, scale=scale),
        out_shape=jax.ShapeDtypeStruct((hout, m_pad * wout), x.dtype),
        grid_spec=pltpu.PrefetchScalarGridSpec(
            num_scalar_prefetch=0,
            grid=grid,
            in_specs=[
                pl.BlockSpec((hout, h), lambda i: (0, 0)),            # AH_total (resident)
                pl.BlockSpec((mt * w, mt * wout), lambda i: (0, 0)),  # blockdiag AWt (resident)
                pl.BlockSpec((h, mt * w), lambda i: (0, i)),          # packed image block
            ],
            out_specs=pl.BlockSpec((hout, mt * wout), lambda i: (0, i)),
        ),
        compiler_params=pltpu.CompilerParams(
            dimension_semantics=("parallel",),     # lets v7x shard blocks over 2 TCs
            vmem_limit_bytes=vmem_limit,
        ),
    )(jnp.asarray(ah, x.dtype), jnp.asarray(bd, x.dtype), xt)

    # (Hout, M_pad*Wout) -> (M, Hout, Wout) -> (B, C, Hout, Wout)
    out = out.reshape(hout, m_pad, wout)[:, :m]
    return jnp.transpose(out, (1, 0, 2)).reshape(b, c, hout, wout)


input_projection_a = jax.jit(_input_projection_a_impl, static_argnums=1)


# ---------------------------------------------------------------------------
# Pure-JAX reference mirroring PyTorch AvgPool2d(3, 2, 1) (count_include_pad=True)
# ---------------------------------------------------------------------------
def _avgpool_ref(x):
    b, c, h, w = x.shape
    hout, wout = (h + 1) // 2, (w + 1) // 2
    xp = jnp.pad(x, ((0, 0), (0, 0), (1, 1), (1, 1)))
    acc = jnp.zeros((b, c, hout, wout), jnp.float32)
    for di in range(3):
        for dj in range(3):
            acc = acc + xp[:, :, di:di + 2 * hout - 1:2,
                           dj:dj + 2 * wout - 1:2].astype(jnp.float32)
    return (acc / 9.0).astype(x.dtype)


def input_projection_a_ref(x, sampling_times):
    for _ in range(sampling_times):
        x = _avgpool_ref(x)
    return x


if __name__ == "__main__":
    key = jax.random.PRNGKey(0)
    B, C, H, W = 2, 3, 16, 16                 # RGB input image, per the module docstring
    x = jax.random.normal(key, (B, C, H, W), dtype=jnp.float32)

    # samplingTimes=2: 16x16 -> 8x8 -> 4x4 (small batch => single full-extent block)
    out = jax.block_until_ready(input_projection_a(x, 2))
    ref = input_projection_a_ref(x, 2)
    assert out.shape == (B, C, 4, 4), out.shape
    assert jnp.allclose(out, ref, atol=1e-4, rtol=1e-4), "mismatch (samplingTimes=2)"

    # samplingTimes=3: 16 -> 8 -> 4 -> 2
    out3 = jax.block_until_ready(input_projection_a(x, 3))
    ref3 = input_projection_a_ref(x, 3)
    assert out3.shape == (B, C, 2, 2), out3.shape
    assert jnp.allclose(out3, ref3, atol=1e-4, rtol=1e-4), "mismatch (samplingTimes=3)"

    # Larger batch to exercise the multi-step, 128-lane-aligned tiled path.
    x_big = jax.random.normal(jax.random.PRNGKey(1), (4, 32, H, W), dtype=jnp.float32)
    out_big = jax.block_until_ready(input_projection_a(x_big, 2))
    ref_big = input_projection_a_ref(x_big, 2)
    assert out_big.shape == (4, 32, 4, 4), out_big.shape
    assert jnp.allclose(out_big, ref_big, atol=1e-4, rtol=1e-4), "mismatch (tiled path)"

    print("KERNEL_OK")
</pallas_src>

<mosaic_0001>
module attributes {stable_mosaic.version = 11 : i64} {
  func.func @_pyramid_kernel(%arg0: i32, %arg1: memref<4x16xf32, #tpu.memory_space<vmem>>, %arg2: memref<96x24xf32, #tpu.memory_space<vmem>>, %arg3: memref<16x96xf32, #tpu.memory_space<vmem>>, %arg4: memref<4x24xf32, #tpu.memory_space<vmem>>) attributes {dimension_semantics = [#tpu.dimension_semantics<parallel>], iteration_bounds = array<i64: 1>, scalar_prefetch = 0 : i64, scratch_operands = 0 : i64, tpu.core_type = #tpu.core_type<tc>, window_params = [{pipeline_mode = #tpu.pipeline_mode<synchronous>, transform_indices = @transform_0, window_bounds = array<i64: 4, 16>}, {pipeline_mode = #tpu.pipeline_mode<synchronous>, transform_indices = @transform_1, window_bounds = array<i64: 96, 24>}, {transform_indices = @transform_2, window_bounds = array<i64: 16, 96>}, {transform_indices = @transform_3, window_bounds = array<i64: 4, 24>}]} {
    %c0 = arith.constant 0 : index
    %c0_0 = arith.constant 0 : index
    %0 = vector.load %arg1[%c0, %c0_0] : memref<4x16xf32, #tpu.memory_space<vmem>>, vector<4x16xf32>
    %c0_1 = arith.constant 0 : index
    %c0_2 = arith.constant 0 : index
    %1 = vector.load %arg3[%c0_1, %c0_2] : memref<16x96xf32, #tpu.memory_space<vmem>>, vector<16x96xf32>
    %cst = arith.constant dense<0.000000e+00> : vector<4x96xf32>
    %2 = tpu.matmul %0, %1, %cst {dimension_numbers = #tpu.dot_dimension_numbers<[1], [0], [0], [1], [0, 0, 1, 1], [], []>, precision = #tpu.contract_precision<fp32>} : vector<4x16xf32>, vector<16x96xf32>, vector<4x96xf32> -> vector<4x96xf32>
    %c0_3 = arith.constant 0 : index
    %c0_4 = arith.constant 0 : index
    %3 = vector.load %arg2[%c0_3, %c0_4] : memref<96x24xf32, #tpu.memory_space<vmem>>, vector<96x24xf32>
    %cst_5 = arith.constant dense<0.000000e+00> : vector<4x24xf32>
    %4 = tpu.matmul %2, %3, %cst_5 {dimension_numbers = #tpu.dot_dimension_numbers<[1], [0], [0], [1], [0, 0, 1, 1], [], []>, precision = #tpu.contract_precision<fp32>} : vector<4x96xf32>, vector<96x24xf32>, vector<4x24xf32> -> vector<4x24xf32>
    %cst_6 = arith.constant 0.0123456791 : f32
    %5 = vector.broadcast %cst_6 : f32 to vector<4x24xf32>
    %6 = arith.mulf %4, %5 : vector<4x24xf32>
    %c0_7 = arith.constant 0 : index
    %c0_8 = arith.constant 0 : index
    %7 = vector.load %arg4[%c0_7, %c0_8] : memref<4x24xf32, #tpu.memory_space<vmem>>, vector<4x24xf32>
    tpu.vector_store %arg4[%c0_7, %c0_8], %6 {strides = array<i32>} : memref<4x24xf32, #tpu.memory_space<vmem>>, vector<4x24xf32>,
    return
  }
  func.func @transform_0(%arg0: i32) -> (i32, i32) {
    %c0_i32 = arith.constant 0 : i32
    %c0_i32_0 = arith.constant 0 : i32
    %c0_i32_1 = arith.constant 0 : i32
    return %c0_i32, %c0_i32_0 : i32, i32
  }
  func.func @transform_1(%arg0: i32) -> (i32, i32) {
    %c0_i32 = arith.constant 0 : i32
    %c0_i32_0 = arith.constant 0 : i32
    %c0_i32_1 = arith.constant 0 : i32
    return %c0_i32, %c0_i32_0 : i32, i32
  }
  func.func @transform_2(%arg0: i32) -> (i32, i32) {
    %c0_i32 = arith.constant 0 : i32
    %c0_i32_0 = arith.constant 0 : i32
    return %c0_i32, %arg0 : i32, i32
  }
  func.func @transform_3(%arg0: i32) -> (i32, i32) {
    %c0_i32 = arith.constant 0 : i32
    %c0_i32_0 = arith.constant 0 : i32
    return %c0_i32, %arg0 : i32, i32
  }
}

</mosaic_0001>

<llo_original>
// kernel: _input_projection_a_impl.1
$region0: #{_input_projection_a_impl.1}
  #allocation0 [shape = 'u32[]', space=smem, size = 0x4, offset = 0x4, fixed_abs, tag = 'smem constant byte address 0x4 - core index']
  #allocation1 [shape = 'u32[72,128]{1,0:T(1,128)}', space=vmem, size = 0x9000, scoped, tag = 'internal scratch']
  %s0 = inlined_call_operand.vmem [shape: f32[4,16], index: 0, kind: input, shape index: {}]
  %s1 = inlined_call_operand.vmem [shape: f32[96,24], index: 1, kind: input, shape index: {}]
  %s2 = inlined_call_operand.vmem [shape: f32[16,96], index: 2, kind: input, shape index: {}]
  %s3 = inlined_call_operand.vmem [shape: f32[4,24], index: 3, kind: output, shape index: {}]
  %s4 = sld [smem:[#allocation0]]
  $region22: #{_input_projection_a_impl.1} parent=0
    _
  %s6 = ssub.s32 1, %s4
  %s7 = scalar_select 0, %s6, %s4
  // Predicated region
  $region2: #{_input_projection_a_impl.1} parent=0 // pred_check
    _
  $region3: #{_input_projection_a_impl.1} parent=0 // pred_check_branch
    %9 = sbr.rel (0) target = $region5
  $region4: #{_input_projection_a_impl.1} parent=0 // pred_region
    _
  $region5: #{_input_projection_a_impl.1} parent=0 // pred_fallthru
    _
  // Predicated region
  $region6: #{_input_projection_a_impl.1} parent=0 // pred_check
    _
  $region7: #{_input_projection_a_impl.1} parent=0 // pred_check_branch
    %11 = sbr.rel (0) target = $region9
  $region8: #{_input_projection_a_impl.1} parent=0 // pred_region
    _
  $region9: #{_input_projection_a_impl.1} parent=0 // pred_fallthru
    _
  // Predicated region
  $region10: #{_input_projection_a_impl.1} parent=0 // pred_check
    _
  $region11: #{_input_projection_a_impl.1} parent=0 // pred_check_branch
    %13 = sbr.rel (0) target = $region13
  $region12: #{_input_projection_a_impl.1} parent=0 // pred_region
    _
  $region13: #{_input_projection_a_impl.1} parent=0 // pred_fallthru
    _
  %v14 = vld [vmem:[%s0] sm:$0xf]
  %v15 = vld [vmem:[%s2] sm:$0xff]
  %v16 = vld [vmem:[%s2 + $0x8] sm:$0xff]
  %vm17 = vcmask 130048
  %v19 = vsel %vm17, %v14, 0
  %21 = vmatpush.msra.mxu0 0.0
  %22 = vmatpush.msra.mxu0 0.0
  %23 = vmatpush.msra.mxu0 0.0
  %24 = vmatpush.msra.mxu0 0.0
  %25 = vmatpush.msra.mxu0 0.0
  %26 = vmatpush.msra.mxu0 0.0
  %27 = vmatpush.msra.mxu0 0.0
  %28 = vmatpush.msra.mxu0 0.0
  %29 = vmatpush.msra.mxu0 0.0
  %30 = vmatpush.msra.mxu0 0.0
  %31 = vmatpush.msra.mxu0 0.0
  %32 = vmatpush.msra.mxu0 0.0
  %33 = vmatpush.msra.mxu0 0.0
  %34 = vmatpush.msra.mxu0 0.0
  %v35 = vand.u32 %v16, 4294901760
  %36 = vmatpush.msra.mxu0 %v35
  %v37 = vand.u32 %v15, 4294901760
  %38 = vmatpush.msra.mxu0 %v37
  %v39 = vand.u32 %v19, 4294901760
  %v40 = vsub.f32 %v19, %v39
  %v41 = vand.u32 %v40, 4294901760
  %v42 = vsub.f32 %v40, %v41
  %v43 = vand.u32 %v42, 4294901760
  %44 = vmatmul.f32.gmra.mxu0 %v43
  %v45 = vpop.f32.mrf.mxu0
  %v46 = vadd.f32 0.0, %v45
  %47 = vdwg.mxu0
  %48 = vmatpush.msra.mxu0 0.0
  %49 = vmatpush.msra.mxu0 0.0
  %50 = vmatpush.msra.mxu0 0.0
  %51 = vmatpush.msra.mxu0 0.0
  %52 = vmatpush.msra.mxu0 0.0
  %53 = vmatpush.msra.mxu0 0.0
  %54 = vmatpush.msra.mxu0 0.0
  %55 = vmatpush.msra.mxu0 0.0
  %56 = vmatpush.msra.mxu0 0.0
  %57 = vmatpush.msra.mxu0 0.0
  %58 = vmatpush.msra.mxu0 0.0
  %59 = vmatpush.msra.mxu0 0.0
  %60 = vmatpush.msra.mxu0 0.0
  %61 = vmatpush.msra.mxu0 0.0
  %v62 = vand.u32 %v16, 4294901760
  %v63 = vsub.f32 %v16, %v62
  %v64 = vand.u32 %v63, 4294901760
  %v65 = vsub.f32 %v63, %v64
  %v66 = vand.u32 %v65, 4294901760
  %67 = vmatpush.msra.mxu0 %v66
  %v68 = vand.u32 %v15, 4294901760
  %v69 = vsub.f32 %v15, %v68
  %v70 = vand.u32 %v69, 4294901760
  %v71 = vsub.f32 %v69, %v70
  %v72 = vand.u32 %v71, 4294901760
  %73 = vmatpush.msra.mxu0 %v72
  %v74 = vand.u32 %v19, 4294901760
  %75 = vmatmul.f32.gmra.mxu0 %v74
  %v76 = vpop.f32.mrf.mxu0
  %v77 = vadd.f32 %v46, %v76
  %78 = vdwg.mxu0
  %79 = vmatpush.msra.mxu0 0.0
  %80 = vmatpush.msra.mxu0 0.0
  %81 = vmatpush.msra.mxu0 0.0
  %82 = vmatpush.msra.mxu0 0.0
  %83 = vmatpush.msra.mxu0 0.0
  %84 = vmatpush.msra.mxu0 0.0
  %85 = vmatpush.msra.mxu0 0.0
  %86 = vmatpush.msra.mxu0 0.0
  %87 = vmatpush.msra.mxu0 0.0
  %88 = vmatpush.msra.mxu0 0.0
  %89 = vmatpush.msra.mxu0 0.0
  %90 = vmatpush.msra.mxu0 0.0
  %91 = vmatpush.msra.mxu0 0.0
  %92 = vmatpush.msra.mxu0 0.0
  %v93 = vand.u32 %v16, 4294901760
  %v94 = vsub.f32 %v16, %v93
  %95 = vmatpush.msra.mxu0 %v94
  %v96 = vand.u32 %v15, 4294901760
  %v97 = vsub.f32 %v15, %v96
  %98 = vmatpush.msra.mxu0 %v97
  %v99 = vand.u32 %v19, 4294901760
  %v100 = vsub.f32 %v19, %v99
  %101 = vmatmul.f32.gmra.mxu0 %v100
  %v102 = vpop.f32.mrf.mxu0
  %v103 = vadd.f32 %v77, %v102
  %104 = vdwg.mxu0
  %105 = vmatpush.msra.mxu0 0.0
  %106 = vmatpush.msra.mxu0 0.0
  %107 = vmatpush.msra.mxu0 0.0
  %108 = vmatpush.msra.mxu0 0.0
  %109 = vmatpush.msra.mxu0 0.0
  %110 = vmatpush.msra.mxu0 0.0
  %111 = vmatpush.msra.mxu0 0.0
  %112 = vmatpush.msra.mxu0 0.0
  %113 = vmatpush.msra.mxu0 0.0
  %114 = vmatpush.msra.mxu0 0.0
  %115 = vmatpush.msra.mxu0 0.0
  %116 = vmatpush.msra.mxu0 0.0
  %117 = vmatpush.msra.mxu0 0.0
  %118 = vmatpush.msra.mxu0 0.0
  %v119 = vand.u32 %v16, 4294901760
  %120 = vmatpush.msra.mxu0 %v119
  %v121 = vand.u32 %v15, 4294901760
  %122 = vmatpush.msra.mxu0 %v121
  %v123 = vand.u32 %v19, 4294901760
  %v124 = vsub.f32 %v19, %v123
  %v125 = vand.u32 %v124, 4294901760
  %126 = vmatmul.f32.gmra.mxu0 %v125
  %v127 = vpop.f32.mrf.mxu0
  %v128 = vadd.f32 %v103, %v127
  %129 = vdwg.mxu0
  %130 = vmatpush.msra.mxu0 0.0
  %131 = vmatpush.msra.mxu0 0.0
  %132 = vmatpush.msra.mxu0 0.0
  %133 = vmatpush.msra.mxu0 0.0
  %134 = vmatpush.msra.mxu0 0.0
  %135 = vmatpush.msra.mxu0 0.0
  %136 = vmatpush.msra.mxu0 0.0
  %137 = vmatpush.msra.mxu0 0.0
  %138 = vmatpush.msra.mxu0 0.0
  %139 = vmatpush.msra.mxu0 0.0
  %140 = vmatpush.msra.mxu0 0.0
  %141 = vmatpush.msra.mxu0 0.0
  %142 = vmatpush.msra.mxu0 0.0
  %143 = vmatpush.msra.mxu0 0.0
  %v144 = vand.u32 %v16, 4294901760
  %v145 = vsub.f32 %v16, %v144
  %v146 = vand.u32 %v145, 4294901760
  %147 = vmatpush.msra.mxu0 %v146
  %v148 = vand.u32 %v15, 4294901760
  %v149 = vsub.f32 %v15, %v148
  %v150 = vand.u32 %v149, 4294901760
  %151 = vmatpush.msra.mxu0 %v150
  %v152 = vand.u32 %v19, 4294901760
  %153 = vmatmul.f32.gmra.mxu0 %v152
  %v154 = vpop.f32.mrf.mxu0
  %v155 = vadd.f32 %v128, %v154
  %156 = vdwg.mxu0
  %157 = vmatpush.msra.mxu0 0.0
  %158 = vmatpush.msra.mxu0 0.0
  %159 = vmatpush.msra.mxu0 0.0
  %160 = vmatpush.msra.mxu0 0.0
  %161 = vmatpush.msra.mxu0 0.0
  %162 = vmatpush.msra.mxu0 0.0
  %163 = vmatpush.msra.mxu0 0.0
  %164 = vmatpush.msra.mxu0 0.0
  %165 = vmatpush.msra.mxu0 0.0
  %166 = vmatpush.msra.mxu0 0.0
  %167 = vmatpush.msra.mxu0 0.0
  %168 = vmatpush.msra.mxu0 0.0
  %169 = vmatpush.msra.mxu0 0.0
  %170 = vmatpush.msra.mxu0 0.0
  %v171 = vand.u32 %v16, 4294901760
  %172 = vmatpush.msra.mxu0 %v171
  %v173 = vand.u32 %v15, 4294901760
  %174 = vmatpush.msra.mxu0 %v173
  %v175 = vand.u32 %v19, 4294901760
  %176 = vmatmul.f32.gmra.mxu0 %v175
  %v177 = vpop.f32.mrf.mxu0
  %v178 = vadd.f32 %v155, %v177
  %179 = vdwg.mxu0
  %v180 = vld [vmem:[%s1] sm:$0xff]
  %v181 = vld [vmem:[%s1 + $0x8] sm:$0xff]
  %v182 = vld [vmem:[%s1 + $0x10] sm:$0xff]
  %v183 = vld [vmem:[%s1 + $0x18] sm:$0xff]
  %v184 = vld [vmem:[%s1 + $0x20] sm:$0xff]
  %v185 = vld [vmem:[%s1 + $0x28] sm:$0xff]
  %v186 = vld [vmem:[%s1 + $0x30] sm:$0xff]
  %v187 = vld [vmem:[%s1 + $0x38] sm:$0xff]
  %v188 = vld [vmem:[%s1 + $0x40] sm:$0xff]
  %v189 = vld [vmem:[%s1 + $0x48] sm:$0xff]
  %v190 = vld [vmem:[%s1 + $0x50] sm:$0xff]
  %v191 = vld [vmem:[%s1 + $0x58] sm:$0xff]
  %vm192 = vcmask 785408
  %v194 = vsel %vm192, %v178, 0
  %196 = vmatpush.msra.mxu0 0.0
  %197 = vmatpush.msra.mxu0 0.0
  %198 = vmatpush.msra.mxu0 0.0
  %199 = vmatpush.msra.mxu0 0.0
  %v200 = vand.u32 %v191, 4294901760
  %201 = vmatpush.msra.mxu0 %v200
  %v202 = vand.u32 %v190, 4294901760
  %203 = vmatpush.msra.mxu0 %v202
  %v204 = vand.u32 %v189, 4294901760
  %205 = vmatpush.msra.mxu0 %v204
  %v206 = vand.u32 %v188, 4294901760
  %207 = vmatpush.msra.mxu0 %v206
  %v208 = vand.u32 %v187, 4294901760
  %209 = vmatpush.msra.mxu0 %v208
  %v210 = vand.u32 %v186, 4294901760
  %211 = vmatpush.msra.mxu0 %v210
  %v212 = vand.u32 %v185, 4294901760
  %213 = vmatpush.msra.mxu0 %v212
  %v214 = vand.u32 %v184, 4294901760
  %215 = vmatpush.msra.mxu0 %v214
  %v216 = vand.u32 %v183, 4294901760
  %217 = vmatpush.msra.mxu0 %v216
  %v218 = vand.u32 %v182, 4294901760
  %219 = vmatpush.msra.mxu0 %v218
  %v220 = vand.u32 %v181, 4294901760
  %221 = vmatpush.msra.mxu0 %v220
  %v222 = vand.u32 %v180, 4294901760
  %223 = vmatpush.msra.mxu0 %v222
  %v224 = vand.u32 %v194, 4294901760
  %v225 = vsub.f32 %v194, %v224
  %v226 = vand.u32 %v225, 4294901760
  %v227 = vsub.f32 %v225, %v226
  %v228 = vand.u32 %v227, 4294901760
  %229 = vmatmul.f32.gmra.mxu0 %v228
  %v230 = vpop.f32.mrf.mxu0
  %v231 = vadd.f32 0.0, %v230
  %232 = vdwg.mxu0
  %233 = vmatpush.msra.mxu0 0.0
  %234 = vmatpush.msra.mxu0 0.0
  %235 = vmatpush.msra.mxu0 0.0
  %236 = vmatpush.msra.mxu0 0.0
  %v237 = vand.u32 %v191, 4294901760
  %v238 = vsub.f32 %v191, %v237
  %v239 = vand.u32 %v238, 4294901760
  %v240 = vsub.f32 %v238, %v239
  %v241 = vand.u32 %v240, 4294901760
  %242 = vmatpush.msra.mxu0 %v241
  %v243 = vand.u32 %v190, 4294901760
  %v244 = vsub.f32 %v190, %v243
  %v245 = vand.u32 %v244, 4294901760
  %v246 = vsub.f32 %v244, %v245
  %v247 = vand.u32 %v246, 4294901760
  %248 = vmatpush.msra.mxu0 %v247
  %v249 = vand.u32 %v189, 4294901760
  %v250 = vsub.f32 %v189, %v249
  %v251 = vand.u32 %v250, 4294901760
  %v252 = vsub.f32 %v250, %v251
  %v253 = vand.u32 %v252, 4294901760
  %254 = vmatpush.msra.mxu0 %v253
  %v255 = vand.u32 %v188, 4294901760
  %v256 = vsub.f32 %v188, %v255
  %v257 = vand.u32 %v256, 4294901760
  %v258 = vsub.f32 %v256, %v257
  %v259 = vand.u32 %v258, 4294901760
  %260 = vmatpush.msra.mxu0 %v259
  %v261 = vand.u32 %v187, 4294901760
  %v262 = vsub.f32 %v187, %v261
  %v263 = vand.u32 %v262, 4294901760
  %v264 = vsub.f32 %v262, %v263
  %v265 = vand.u32 %v264, 4294901760
  %266 = vmatpush.msra.mxu0 %v265
  %v267 = vand.u32 %v186, 4294901760
  %v268 = vsub.f32 %v186, %v267
  %v269 = vand.u32 %v268, 4294901760
  %v270 = vsub.f32 %v268, %v269
  %v271 = vand.u32 %v270, 4294901760
  %272 = vmatpush.msra.mxu0 %v271
  %v273 = vand.u32 %v185, 4294901760
  %v274 = vsub.f32 %v185, %v273
  %v275 = vand.u32 %v274, 4294901760
  %v276 = vsub.f32 %v274, %v275
  %v277 = vand.u32 %v276, 4294901760
  %278 = vmatpush.msra.mxu0 %v277
  %v279 = vand.u32 %v184, 4294901760
  %v280 = vsub.f32 %v184, %v279
  %v281 = vand.u32 %v280, 4294901760
  %v282 = vsub.f32 %v280, %v281
  %v283 = vand.u32 %v282, 4294901760
  %284 = vmatpush.msra.mxu0 %v283
  %v285 = vand.u32 %v183, 4294901760
  %v286 = vsub.f32 %v183, %v285
  %v287 = vand.u32 %v286, 4294901760
  %v288 = vsub.f32 %v286, %v287
  %v289 = vand.u32 %v288, 4294901760
  %290 = vmatpush.msra.mxu0 %v289
  %v291 = vand.u32 %v182, 4294901760
  %v292 = vsub.f32 %v182, %v291
  %v293 = vand.u32 %v292, 4294901760
  %v294 = vsub.f32 %v292, %v293
  %v295 = vand.u32 %v294, 4294901760
  %296 = vmatpush.msra.mxu0 %v295
  %v297 = vand.u32 %v181, 4294901760
  %v298 = vsub.f32 %v181, %v297
  %v299 = vand.u32 %v298, 4294901760
  %v300 = vsub.f32 %v298, %v299
  %v301 = vand.u32 %v300, 4294901760
  %302 = vmatpush.msra.mxu0 %v301
  %v303 = vand.u32 %v180, 4294901760
  %v304 = vsub.f32 %v180, %v303
  %v305 = vand.u32 %v304, 4294901760
  %v306 = vsub.f32 %v304, %v305
  %v307 = vand.u32 %v306, 4294901760
  %308 = vmatpush.msra.mxu0 %v307
  %v309 = vand.u32 %v194, 4294901760
  %310 = vmatmul.f32.gmra.mxu0 %v309
  %v311 = vpop.f32.mrf.mxu0
  %v312 = vadd.f32 %v231, %v311
  %313 = vdwg.mxu0
  %314 = vmatpush.msra.mxu0 0.0
  %315 = vmatpush.msra.mxu0 0.0
  %316 = vmatpush.msra.mxu0 0.0
  %317 = vmatpush.msra.mxu0 0.0
  %v318 = vand.u32 %v191, 4294901760
  %v319 = vsub.f32 %v191, %v318
  %320 = vmatpush.msra.mxu0 %v319
  %v321 = vand.u32 %v190, 4294901760
  %v322 = vsub.f32 %v190, %v321
  %323 = vmatpush.msra.mxu0 %v322
  %v324 = vand.u32 %v189, 4294901760
  %v325 = vsub.f32 %v189, %v324
  %326 = vmatpush.msra.mxu0 %v325
  %v327 = vand.u32 %v188, 4294901760
  %v328 = vsub.f32 %v188, %v327
  %329 = vmatpush.msra.mxu0 %v328
  %v330 = vand.u32 %v187, 4294901760
  %v331 = vsub.f32 %v187, %v330
  %332 = vmatpush.msra.mxu0 %v331
  %v333 = vand.u32 %v186, 4294901760
  %v334 = vsub.f32 %v186, %v333
  %335 = vmatpush.msra.mxu0 %v334
  %v336 = vand.u32 %v185, 4294901760
  %v337 = vsub.f32 %v185, %v336
  %338 = vmatpush.msra.mxu0 %v337
  %v339 = vand.u32 %v184, 4294901760
  %v340 = vsub.f32 %v184, %v339
  %341 = vmatpush.msra.mxu0 %v340
  %v342 = vand.u32 %v183, 4294901760
  %v343 = vsub.f32 %v183, %v342
  %344 = vmatpush.msra.mxu0 %v343
  %v345 = vand.u32 %v182, 4294901760
  %v346 = vsub.f32 %v182, %v345
  %347 = vmatpush.msra.mxu0 %v346
  %v348 = vand.u32 %v181, 4294901760
  %v349 = vsub.f32 %v181, %v348
  %350 = vmatpush.msra.mxu0 %v349
  %v351 = vand.u32 %v180, 4294901760
  %v352 = vsub.f32 %v180, %v351
  %353 = vmatpush.msra.mxu0 %v352
  %v354 = vand.u32 %v194, 4294901760
  %v355 = vsub.f32 %v194, %v354
  %356 = vmatmul.f32.gmra.mxu0 %v355
  %v357 = vpop.f32.mrf.mxu0
  %v358 = vadd.f32 %v312, %v357
  %359 = vdwg.mxu0
  %360 = vmatpush.msra.mxu0 0.0
  %361 = vmatpush.msra.mxu0 0.0
  %362 = vmatpush.msra.mxu0 0.0
  %363 = vmatpush.msra.mxu0 0.0
  %v364 = vand.u32 %v191, 4294901760
  %365 = vmatpush.msra.mxu0 %v364
  %v366 = vand.u32 %v190, 4294901760
  %367 = vmatpush.msra.mxu0 %v366
  %v368 = vand.u32 %v189, 4294901760
  %369 = vmatpush.msra.mxu0 %v368
  %v370 = vand.u32 %v188, 4294901760
  %371 = vmatpush.msra.mxu0 %v370
  %v372 = vand.u32 %v187, 4294901760
  %373 = vmatpush.msra.mxu0 %v372
  %v374 = vand.u32 %v186, 4294901760
  %375 = vmatpush.msra.mxu0 %v374
  %v376 = vand.u32 %v185, 4294901760
  %377 = vmatpush.msra.mxu0 %v376
  %v378 = vand.u32 %v184, 4294901760
  %379 = vmatpush.msra.mxu0 %v378
  %v380 = vand.u32 %v183, 4294901760
  %381 = vmatpush.msra.mxu0 %v380
  %v382 = vand.u32 %v182, 4294901760
  %383 = vmatpush.msra.mxu0 %v382
  %v384 = vand.u32 %v181, 4294901760
  %385 = vmatpush.msra.mxu0 %v384
  %v386 = vand.u32 %v180, 4294901760
  %387 = vmatpush.msra.mxu0 %v386
  %v388 = vand.u32 %v194, 4294901760
  %v389 = vsub.f32 %v194, %v388
  %v390 = vand.u32 %v389, 4294901760
  %391 = vmatmul.f32.gmra.mxu0 %v390
  %v392 = vpop.f32.mrf.mxu0
  %v393 = vadd.f32 %v358, %v392
  %394 = vdwg.mxu0
  %395 = vmatpush.msra.mxu0 0.0
  %396 = vmatpush.msra.mxu0 0.0
  %397 = vmatpush.msra.mxu0 0.0
  %398 = vmatpush.msra.mxu0 0.0
  %v399 = vand.u32 %v191, 4294901760
  %v400 = vsub.f32 %v191, %v399
  %v401 = vand.u32 %v400, 4294901760
  %402 = vmatpush.msra.mxu0 %v401
  %v403 = vand.u32 %v190, 4294901760
  %v404 = vsub.f32 %v190, %v403
  %v405 = vand.u32 %v404, 4294901760
  %406 = vmatpush.msra.mxu0 %v405
  %v407 = vand.u32 %v189, 4294901760
  %v408 = vsub.f32 %v189, %v407
  %v409 = vand.u32 %v408, 4294901760
  %410 = vmatpush.msra.mxu0 %v409
  %v411 = vand.u32 %v188, 4294901760
  %v412 = vsub.f32 %v188, %v411
  %v413 = vand.u32 %v412, 4294901760
  %414 = vmatpush.msra.mxu0 %v413
  %v415 = vand.u32 %v187, 4294901760
  %v416 = vsub.f32 %v187, %v415
  %v417 = vand.u32 %v416, 4294901760
  %418 = vmatpush.msra.mxu0 %v417
  %v419 = vand.u32 %v186, 4294901760
  %v420 = vsub.f32 %v186, %v419
  %v421 = vand.u32 %v420, 4294901760
  %422 = vmatpush.msra.mxu0 %v421
  %v423 = vand.u32 %v185, 4294901760
  %v424 = vsub.f32 %v185, %v423
  %v425 = vand.u32 %v424, 4294901760
  %426 = vmatpush.msra.mxu0 %v425
  %v427 = vand.u32 %v184, 4294901760
  %v428 = vsub.f32 %v184, %v427
  %v429 = vand.u32 %v428, 4294901760
  %430 = vmatpush.msra.mxu0 %v429
  %v431 = vand.u32 %v183, 4294901760
  %v432 = vsub.f32 %v183, %v431
  %v433 = vand.u32 %v432, 4294901760
  %434 = vmatpush.msra.mxu0 %v433
  %v435 = vand.u32 %v182, 4294901760
  %v436 = vsub.f32 %v182, %v435
  %v437 = vand.u32 %v436, 4294901760
  %438 = vmatpush.msra.mxu0 %v437
  %v439 = vand.u32 %v181, 4294901760
  %v440 = vsub.f32 %v181, %v439
  %v441 = vand.u32 %v440, 4294901760
  %442 = vmatpush.msra.mxu0 %v441
  %v443 = vand.u32 %v180, 4294901760
  %v444 = vsub.f32 %v180, %v443
  %v445 = vand.u32 %v444, 4294901760
  %446 = vmatpush.msra.mxu0 %v445
  %v447 = vand.u32 %v194, 4294901760
  %448 = vmatmul.f32.gmra.mxu0 %v447
  %v449 = vpop.f32.mrf.mxu0
  %v450 = vadd.f32 %v393, %v449
  %451 = vdwg.mxu0
  %452 = vmatpush.msra.mxu0 0.0
  %453 = vmatpush.msra.mxu0 0.0
  %454 = vmatpush.msra.mxu0 0.0
  %455 = vmatpush.msra.mxu0 0.0
  %v456 = vand.u32 %v191, 4294901760
  %457 = vmatpush.msra.mxu0 %v456
  %v458 = vand.u32 %v190, 4294901760
  %459 = vmatpush.msra.mxu0 %v458
  %v460 = vand.u32 %v189, 4294901760
  %461 = vmatpush.msra.mxu0 %v460
  %v462 = vand.u32 %v188, 4294901760
  %463 = vmatpush.msra.mxu0 %v462
  %v464 = vand.u32 %v187, 4294901760
  %465 = vmatpush.msra.mxu0 %v464
  %v466 = vand.u32 %v186, 4294901760
  %467 = vmatpush.msra.mxu0 %v466
  %v468 = vand.u32 %v185, 4294901760
  %469 = vmatpush.msra.mxu0 %v468
  %v470 = vand.u32 %v184, 4294901760
  %471 = vmatpush.msra.mxu0 %v470
  %v472 = vand.u32 %v183, 4294901760
  %473 = vmatpush.msra.mxu0 %v472
  %v474 = vand.u32 %v182, 4294901760
  %475 = vmatpush.msra.mxu0 %v474
  %v476 = vand.u32 %v181, 4294901760
  %477 = vmatpush.msra.mxu0 %v476
  %v478 = vand.u32 %v180, 4294901760
  %479 = vmatpush.msra.mxu0 %v478
  %v480 = vand.u32 %v194, 4294901760
  %481 = vmatmul.f32.gmra.mxu0 %v480
  %v482 = vpop.f32.mrf.mxu0
  %v483 = vadd.f32 %v450, %v482
  %484 = vdwg.mxu0
  %v485 = vmul.f32 %v483, 0.012345679
  %vm486 = vcmask 191488
  %487 = vst.msk [vmem:[%s3] sm:$0xf] %vm486, %v485
  // Predicated region
  $region14: #{_input_projection_a_impl.1} parent=0 // pred_check
    _
  $region15: #{_input_projection_a_impl.1} parent=0 // pred_check_branch
    %489 = sbr.rel (0) target = $region17
  $region16: #{_input_projection_a_impl.1} parent=0 // pred_region
    _
  $region17: #{_input_projection_a_impl.1} parent=0 // pred_fallthru
    _
  // Predicated region
  $region18: #{_input_projection_a_impl.1} parent=0 // pred_check
    _
  $region19: #{_input_projection_a_impl.1} parent=0 // pred_check_branch
    %491 = sbr.rel (0) target = $region21
  $region20: #{_input_projection_a_impl.1} parent=0 // pred_region
    _
  $region21: #{_input_projection_a_impl.1} parent=0 // pred_fallthru
    _

</llo_original>
